<compile_context>
chip_gen: v5e
topology: v5e:2x2
jax: 0.10.0
libtpu: 0.0.40
codegen_flags: <defaults>
</compile_context>

<pallas_src>
import jax
import jax.numpy as jnp
from jax import lax
from jax.experimental import pallas as pl
from jax.experimental.pallas import tpu as pltpu

_TB_CAP = 4096  # batch-tile cap: multiple of 512, ~16 MiB VMEM working set


def _mlp_kernel(x_ref, w1_ref, b1_ref, w2_ref, b2_ref, w3_ref, b3_ref, o_ref):
    # x tile: (tb, 6); weights are (in, out); biases are (1, out).
    hp = lax.Precision.HIGHEST
    x = x_ref[...]                                                    # (tb, 6)
    h1 = jnp.dot(x, w1_ref[...], precision=hp,
                 preferred_element_type=jnp.float32)
    h1 = jnp.maximum(h1 + b1_ref[...], 0.0)                           # (tb, 64)
    h2 = jnp.dot(h1, w2_ref[...], precision=hp,
                 preferred_element_type=jnp.float32)
    h2 = jnp.maximum(h2 + b2_ref[...], 0.0)                           # (tb, 32)
    out = jnp.dot(h2, w3_ref[...], precision=hp,
                  preferred_element_type=jnp.float32)
    o_ref[...] = (out + b3_ref[...]).astype(o_ref.dtype)              # (tb, 5)


@jax.jit
def behavior_cloning_forward(x, params):
    """Forward pass.

    x:      (B, 6) float32 (PyTorch convention).
    params: (w1, b1, w2, b2, w3, b3) in PyTorch layout
            w_k: (out_k, in_k), b_k: (out_k,).
    Returns (B, 5) float32.
    """
    w1, b1, w2, b2, w3, b3 = params
    B = x.shape[0]
    in_dim = w1.shape[1]    # 6
    out_dim = w3.shape[0]   # 5

    # Adaptive batch tile: either == B (always a legal block) or the 512-aligned cap.
    tb = B if B <= _TB_CAP else _TB_CAP

    # Pad only when a large batch is not a multiple of the tile.
    if B % tb != 0:
        b_pad = pl.cdiv(B, tb) * tb
        x_in = jnp.pad(x, ((0, b_pad - B), (0, 0)))
    else:
        b_pad = B
        x_in = x
    grid = (b_pad // tb,)

    # Weights as (in, out), biases as (1, out): tiny, O(1) in B.
    w1t, w2t, w3t = w1.T, w2.T, w3.T
    b1r, b2r, b3r = b1.reshape(1, -1), b2.reshape(1, -1), b3.reshape(1, -1)

    # Constant index_map -> resident in VMEM across grid steps.
    resident = lambda a: pl.BlockSpec(a.shape, lambda i: (0, 0))

    flops = 2 * b_pad * (6 * 64 + 64 * 32 + 32 * 5)
    weight_bytes = 4 * (6 * 64 + 64 + 64 * 32 + 32 + 32 * 5 + 5)
    bytes_accessed = 4 * b_pad * (in_dim + out_dim) + weight_bytes

    out = pl.pallas_call(
        _mlp_kernel,
        out_shape=jax.ShapeDtypeStruct((b_pad, out_dim), jnp.float32),
        grid=grid,
        in_specs=[
            pl.BlockSpec((tb, in_dim), lambda i: (i, 0)),   # contiguous (tb,6) DMA
            resident(w1t), resident(b1r),
            resident(w2t), resident(b2r),
            resident(w3t), resident(b3r),
        ],
        out_specs=pl.BlockSpec((tb, out_dim), lambda i: (i, 0)),
        compiler_params=pltpu.CompilerParams(
            dimension_semantics=("parallel",),
            vmem_limit_bytes=48 * 1024 * 1024),
        cost_estimate=pl.CostEstimate(
            flops=flops, transcendentals=0, bytes_accessed=bytes_accessed),
    )(x_in, w1t, b1r, w2t, b2r, w3t, b3r)

    return out if b_pad == B else out[:B]


def init_params(key):
    """Deterministic init mimicking nn.Linear default (uniform +/- 1/sqrt(fan_in)).

    Weights in PyTorch layout: (out_features, in_features); biases: (out_features,).
    """
    dims = [(6, 64), (64, 32), (32, 5)]
    params = []
    for (fan_in, fan_out) in dims:
        key, kw, kb = jax.random.split(key, 3)
        bound = 1.0 / jnp.sqrt(fan_in)
        w = jax.random.uniform(kw, (fan_out, fan_in), jnp.float32, -bound, bound)
        b = jax.random.uniform(kb, (fan_out,), jnp.float32, -bound, bound)
        params += [w, b]
    return tuple(params)


def reference_forward(x, params):
    """Plain-JAX reference with PyTorch semantics: y = x @ W^T + b."""
    w1, b1, w2, b2, w3, b3 = params
    hp = lax.Precision.HIGHEST
    h1 = jnp.maximum(jnp.dot(x, w1.T, precision=hp) + b1, 0.0)
    h2 = jnp.maximum(jnp.dot(h1, w2.T, precision=hp) + b2, 0.0)
    return jnp.dot(h2, w3.T, precision=hp) + b3


if __name__ == "__main__":
    key = jax.random.PRNGKey(0)
    key, k_small, k_mid, k_large = jax.random.split(key, 4)
    params = init_params(key)

    # Small batch (intended use), a mid batch with a non-8-aligned size
    # (single-tile, block dims == array dims), and a large batch that
    # exercises the multi-step "parallel" grid path.
    for B, kx in ((8, k_small), (1000, k_mid), (8192, k_large)):
        x = jax.random.normal(kx, (B, 6), jnp.float32)
        out = jax.block_until_ready(behavior_cloning_forward(x, params))
        ref = reference_forward(x, params)
        assert out.shape == (B, 5)
        err = float(jnp.max(jnp.abs(out - ref)))
        assert jnp.allclose(out, ref, atol=1e-4, rtol=1e-4), err

    print("KERNEL_OK")
</pallas_src>

<mosaic_0001>
module attributes {stable_mosaic.version = 11 : i64} {
  func.func @_mlp_kernel(%arg0: i32, %arg1: memref<8x6xf32, #tpu.memory_space<vmem>>, %arg2: memref<6x64xf32, #tpu.memory_space<vmem>>, %arg3: memref<1x64xf32, #tpu.memory_space<vmem>>, %arg4: memref<64x32xf32, #tpu.memory_space<vmem>>, %arg5: memref<1x32xf32, #tpu.memory_space<vmem>>, %arg6: memref<32x5xf32, #tpu.memory_space<vmem>>, %arg7: memref<1x5xf32, #tpu.memory_space<vmem>>, %arg8: memref<8x5xf32, #tpu.memory_space<vmem>>) attributes {dimension_semantics = [#tpu.dimension_semantics<parallel>], iteration_bounds = array<i64: 1>, scalar_prefetch = 0 : i64, scratch_operands = 0 : i64, tpu.core_type = #tpu.core_type<tc>, window_params = [{transform_indices = @transform_0, window_bounds = array<i64: 8, 6>}, {pipeline_mode = #tpu.pipeline_mode<synchronous>, transform_indices = @transform_1, window_bounds = array<i64: 6, 64>}, {pipeline_mode = #tpu.pipeline_mode<synchronous>, transform_indices = @transform_2, window_bounds = array<i64: 1, 64>}, {pipeline_mode = #tpu.pipeline_mode<synchronous>, transform_indices = @transform_3, window_bounds = array<i64: 64, 32>}, {pipeline_mode = #tpu.pipeline_mode<synchronous>, transform_indices = @transform_4, window_bounds = array<i64: 1, 32>}, {pipeline_mode = #tpu.pipeline_mode<synchronous>, transform_indices = @transform_5, window_bounds = array<i64: 32, 5>}, {pipeline_mode = #tpu.pipeline_mode<synchronous>, transform_indices = @transform_6, window_bounds = array<i64: 1, 5>}, {transform_indices = @transform_7, window_bounds = array<i64: 8, 5>}]} {
    %c0 = arith.constant 0 : index
    %c0_0 = arith.constant 0 : index
    %0 = vector.load %arg1[%c0, %c0_0] : memref<8x6xf32, #tpu.memory_space<vmem>>, vector<8x6xf32>
    %c0_1 = arith.constant 0 : index
    %c0_2 = arith.constant 0 : index
    %1 = vector.load %arg2[%c0_1, %c0_2] : memref<6x64xf32, #tpu.memory_space<vmem>>, vector<6x64xf32>
    %cst = arith.constant dense<0.000000e+00> : vector<8x64xf32>
    %2 = tpu.matmul %0, %1, %cst {dimension_numbers = #tpu.dot_dimension_numbers<[1], [0], [0], [1], [0, 0, 1, 1], [], []>, precision = #tpu.contract_precision<fp32>} : vector<8x6xf32>, vector<6x64xf32>, vector<8x64xf32> -> vector<8x64xf32>
    %c0_3 = arith.constant 0 : index
    %c0_4 = arith.constant 0 : index
    %3 = vector.load %arg3[%c0_3, %c0_4] : memref<1x64xf32, #tpu.memory_space<vmem>>, vector<1x64xf32>
    %4 = vector.broadcast %3 : vector<1x64xf32> to vector<8x64xf32>
    %5 = arith.addf %2, %4 : vector<8x64xf32>
    %cst_5 = arith.constant 0.000000e+00 : f32
    %6 = vector.broadcast %cst_5 : f32 to vector<8x64xf32>
    %7 = arith.maximumf %5, %6 : vector<8x64xf32>
    %c0_6 = arith.constant 0 : index
    %c0_7 = arith.constant 0 : index
    %8 = vector.load %arg4[%c0_6, %c0_7] : memref<64x32xf32, #tpu.memory_space<vmem>>, vector<64x32xf32>
    %cst_8 = arith.constant dense<0.000000e+00> : vector<8x32xf32>
    %9 = tpu.matmul %7, %8, %cst_8 {dimension_numbers = #tpu.dot_dimension_numbers<[1], [0], [0], [1], [0, 0, 1, 1], [], []>, precision = #tpu.contract_precision<fp32>} : vector<8x64xf32>, vector<64x32xf32>, vector<8x32xf32> -> vector<8x32xf32>
    %c0_9 = arith.constant 0 : index
    %c0_10 = arith.constant 0 : index
    %10 = vector.load %arg5[%c0_9, %c0_10] : memref<1x32xf32, #tpu.memory_space<vmem>>, vector<1x32xf32>
    %11 = vector.broadcast %10 : vector<1x32xf32> to vector<8x32xf32>
    %12 = arith.addf %9, %11 : vector<8x32xf32>
    %cst_11 = arith.constant 0.000000e+00 : f32
    %13 = vector.broadcast %cst_11 : f32 to vector<8x32xf32>
    %14 = arith.maximumf %12, %13 : vector<8x32xf32>
    %c0_12 = arith.constant 0 : index
    %c0_13 = arith.constant 0 : index
    %15 = vector.load %arg6[%c0_12, %c0_13] : memref<32x5xf32, #tpu.memory_space<vmem>>, vector<32x5xf32>
    %cst_14 = arith.constant dense<0.000000e+00> : vector<8x5xf32>
    %16 = tpu.matmul %14, %15, %cst_14 {dimension_numbers = #tpu.dot_dimension_numbers<[1], [0], [0], [1], [0, 0, 1, 1], [], []>, precision = #tpu.contract_precision<fp32>} : vector<8x32xf32>, vector<32x5xf32>, vector<8x5xf32> -> vector<8x5xf32>
    %c0_15 = arith.constant 0 : index
    %c0_16 = arith.constant 0 : index
    %17 = vector.load %arg7[%c0_15, %c0_16] : memref<1x5xf32, #tpu.memory_space<vmem>>, vector<1x5xf32>
    %18 = vector.broadcast %17 : vector<1x5xf32> to vector<8x5xf32>
    %19 = arith.addf %16, %18 : vector<8x5xf32>
    %c0_17 = arith.constant 0 : index
    %c0_18 = arith.constant 0 : index
    %20 = vector.load %arg8[%c0_17, %c0_18] : memref<8x5xf32, #tpu.memory_space<vmem>>, vector<8x5xf32>
    tpu.vector_store %arg8[%c0_17, %c0_18], %19 {strides = array<i32>} : memref<8x5xf32, #tpu.memory_space<vmem>>, vector<8x5xf32>,
    return
  }
  func.func @transform_0(%arg0: i32) -> (i32, i32) {
    %c0_i32 = arith.constant 0 : i32
    %c0_i32_0 = arith.constant 0 : i32
    return %arg0, %c0_i32 : i32, i32
  }
  func.func @transform_1(%arg0: i32) -> (i32, i32) {
    %c0_i32 = arith.constant 0 : i32
    %c0_i32_0 = arith.constant 0 : i32
    %c0_i32_1 = arith.constant 0 : i32
    return %c0_i32, %c0_i32_0 : i32, i32
  }
  func.func @transform_2(%arg0: i32) -> (i32, i32) {
    %c0_i32 = arith.constant 0 : i32
    %c0_i32_0 = arith.constant 0 : i32
    %c0_i32_1 = arith.constant 0 : i32
    return %c0_i32, %c0_i32_0 : i32, i32
  }
  func.func @transform_3(%arg0: i32) -> (i32, i32) {
    %c0_i32 = arith.constant 0 : i32
    %c0_i32_0 = arith.constant 0 : i32
    %c0_i32_1 = arith.constant 0 : i32
    return %c0_i32, %c0_i32_0 : i32, i32
  }
  func.func @transform_4(%arg0: i32) -> (i32, i32) {
    %c0_i32 = arith.constant 0 : i32
    %c0_i32_0 = arith.constant 0 : i32
    %c0_i32_1 = arith.constant 0 : i32
    return %c0_i32, %c0_i32_0 : i32, i32
  }
  func.func @transform_5(%arg0: i32) -> (i32, i32) {
    %c0_i32 = arith.constant 0 : i32
    %c0_i32_0 = arith.constant 0 : i32
    %c0_i32_1 = arith.constant 0 : i32
    return %c0_i32, %c0_i32_0 : i32, i32
  }
  func.func @transform_6(%arg0: i32) -> (i32, i32) {
    %c0_i32 = arith.constant 0 : i32
    %c0_i32_0 = arith.constant 0 : i32
    %c0_i32_1 = arith.constant 0 : i32
    return %c0_i32, %c0_i32_0 : i32, i32
  }
  func.func @transform_7(%arg0: i32) -> (i32, i32) {
    %c0_i32 = arith.constant 0 : i32
    %c0_i32_0 = arith.constant 0 : i32
    return %arg0, %c0_i32 : i32, i32
  }
}

</mosaic_0001>

<llo_original>
// kernel: behavior_cloning_forward.1
$region0: #{behavior_cloning_forward.1}
  #allocation0 [shape = 'u32[]', space=smem, size = 0x4, offset = 0x4, fixed_abs, tag = 'smem constant byte address 0x4 - core index']
  #allocation1 [shape = 'u32[72,128]{1,0:T(1,128)}', space=vmem, size = 0x9000, scoped, tag = 'internal scratch']
  %s0 = inlined_call_operand.vmem [shape: f32[8,6], index: 0, kind: input, shape index: {}]
  %s1 = inlined_call_operand.vmem [shape: f32[6,64], index: 1, kind: input, shape index: {}]
  %s2 = inlined_call_operand.vmem [shape: f32[1,64], index: 2, kind: input, shape index: {}]
  %s3 = inlined_call_operand.vmem [shape: f32[64,32], index: 3, kind: input, shape index: {}]
  %s4 = inlined_call_operand.vmem [shape: f32[1,32], index: 4, kind: input, shape index: {}]
  %s5 = inlined_call_operand.vmem [shape: f32[32,5], index: 5, kind: input, shape index: {}]
  %s6 = inlined_call_operand.vmem [shape: f32[1,5], index: 6, kind: input, shape index: {}]
  %s7 = inlined_call_operand.hbm [shape: f32[8,5], index: 7, kind: output, shape index: {}]
  %s8 = sld [smem:[#allocation0]]
  $region38: #{behavior_cloning_forward.1} parent=0
    _
  %s10 = ssub.s32 1, %s8
  %s11 = scalar_select 0, %s10, %s8
  $region1: #{behavior_cloning_forward.1} parent=0
    #allocation2 [shape = 'u8[4096]{0}', space=vmem, size = 0x1000, scoped, tag = 'output window, operand 0, single buffered']
    #allocation3 [shape = 's32[1]{0}', space=sflag, size = 0x4, scoped, tag = 'scoped memory for behavior_cloning_forward.1']
    %12 = vsyncpa [#allocation3], 0
    // Predicated region
    $region2: #{behavior_cloning_forward.1} parent=1 // pred_check
      _
    $region3: #{behavior_cloning_forward.1} parent=1 // pred_check_branch
      %14 = sbr.rel (0) target = $region5
    $region4: #{behavior_cloning_forward.1} parent=1 // pred_region
      _
    $region5: #{behavior_cloning_forward.1} parent=1 // pred_fallthru
      _
    // Predicated region
    $region6: #{behavior_cloning_forward.1} parent=1 // pred_check
      _
    $region7: #{behavior_cloning_forward.1} parent=1 // pred_check_branch
      %16 = sbr.rel (0) target = $region9
    $region8: #{behavior_cloning_forward.1} parent=1 // pred_region
      _
    $region9: #{behavior_cloning_forward.1} parent=1 // pred_fallthru
      _
    // Predicated region
    $region10: #{behavior_cloning_forward.1} parent=1 // pred_check
      _
    $region11: #{behavior_cloning_forward.1} parent=1 // pred_check_branch
      %18 = sbr.rel (0) target = $region13
    $region12: #{behavior_cloning_forward.1} parent=1 // pred_region
      _
    $region13: #{behavior_cloning_forward.1} parent=1 // pred_fallthru
      _
    // Predicated region
    $region14: #{behavior_cloning_forward.1} parent=1 // pred_check
      _
    $region15: #{behavior_cloning_forward.1} parent=1 // pred_check_branch
      %20 = sbr.rel (0) target = $region17
    $region16: #{behavior_cloning_forward.1} parent=1 // pred_region
      _
    $region17: #{behavior_cloning_forward.1} parent=1 // pred_fallthru
      _
    // Predicated region
    $region18: #{behavior_cloning_forward.1} parent=1 // pred_check
      _
    $region19: #{behavior_cloning_forward.1} parent=1 // pred_check_branch
      %22 = sbr.rel (0) target = $region21
    $region20: #{behavior_cloning_forward.1} parent=1 // pred_region
      _
    $region21: #{behavior_cloning_forward.1} parent=1 // pred_fallthru
      _
    // Predicated region
    $region22: #{behavior_cloning_forward.1} parent=1 // pred_check
      _
    $region23: #{behavior_cloning_forward.1} parent=1 // pred_check_branch
      %24 = sbr.rel (0) target = $region25
    $region24: #{behavior_cloning_forward.1} parent=1 // pred_region
      _
    $region25: #{behavior_cloning_forward.1} parent=1 // pred_fallthru
      _
    // Predicated region
    $region26: #{behavior_cloning_forward.1} parent=1 // pred_check
      _
    $region27: #{behavior_cloning_forward.1} parent=1 // pred_check_branch
      %26 = sbr.rel (0) target = $region29
    $region28: #{behavior_cloning_forward.1} parent=1 // pred_region
      _
    $region29: #{behavior_cloning_forward.1} parent=1 // pred_fallthru
      _
    %v27 = vld [vmem:[%s0] sm:$0xff]
    %v28 = vld [vmem:[%s1] sm:$0x3f]
    %v29 = vld [vmem:[%s2] sm:$0x1]
    %v31 = vperm.slane %v29, 0
    %vm33 = vcmask 48128
    %v35 = vsel %vm33, %v27, 0
    %vm37 = vcmask 1045504
    %v39 = vsel %vm37, %v28, 0
    %41 = vmatpush.msra.mxu0 0.0
    %42 = vmatpush.msra.mxu0 0.0
    %43 = vmatpush.msra.mxu0 0.0
    %44 = vmatpush.msra.mxu0 0.0
    %45 = vmatpush.msra.mxu0 0.0
    %46 = vmatpush.msra.mxu0 0.0
    %47 = vmatpush.msra.mxu0 0.0
    %48 = vmatpush.msra.mxu0 0.0
    %49 = vmatpush.msra.mxu0 0.0
    %50 = vmatpush.msra.mxu0 0.0
    %51 = vmatpush.msra.mxu0 0.0
    %52 = vmatpush.msra.mxu0 0.0
    %53 = vmatpush.msra.mxu0 0.0
    %54 = vmatpush.msra.mxu0 0.0
    %55 = vmatpush.msra.mxu0 0.0
    %v56 = vand.u32 %v39, 4294901760
    %57 = vmatpush.msra.mxu0 %v56
    %v58 = vand.u32 %v35, 4294901760
    %v59 = vsub.f32 %v35, %v58
    %v60 = vand.u32 %v59, 4294901760
    %v61 = vsub.f32 %v59, %v60
    %v62 = vand.u32 %v61, 4294901760
    %63 = vmatmul.f32.gmra.mxu0 %v62
    %v64 = vpop.f32.mrf.mxu0
    %v65 = vadd.f32 %v31, %v64
    %66 = vdwg.mxu0
    %67 = vmatpush.msra.mxu0 0.0
    %68 = vmatpush.msra.mxu0 0.0
    %69 = vmatpush.msra.mxu0 0.0
    %70 = vmatpush.msra.mxu0 0.0
    %71 = vmatpush.msra.mxu0 0.0
    %72 = vmatpush.msra.mxu0 0.0
    %73 = vmatpush.msra.mxu0 0.0
    %74 = vmatpush.msra.mxu0 0.0
    %75 = vmatpush.msra.mxu0 0.0
    %76 = vmatpush.msra.mxu0 0.0
    %77 = vmatpush.msra.mxu0 0.0
    %78 = vmatpush.msra.mxu0 0.0
    %79 = vmatpush.msra.mxu0 0.0
    %80 = vmatpush.msra.mxu0 0.0
    %81 = vmatpush.msra.mxu0 0.0
    %v82 = vand.u32 %v39, 4294901760
    %v83 = vsub.f32 %v39, %v82
    %v84 = vand.u32 %v83, 4294901760
    %v85 = vsub.f32 %v83, %v84
    %v86 = vand.u32 %v85, 4294901760
    %87 = vmatpush.msra.mxu0 %v86
    %v88 = vand.u32 %v35, 4294901760
    %89 = vmatmul.f32.gmra.mxu0 %v88
    %v90 = vpop.f32.mrf.mxu0
    %v91 = vadd.f32 %v65, %v90
    %92 = vdwg.mxu0
    %93 = vmatpush.msra.mxu0 0.0
    %94 = vmatpush.msra.mxu0 0.0
    %95 = vmatpush.msra.mxu0 0.0
    %96 = vmatpush.msra.mxu0 0.0
    %97 = vmatpush.msra.mxu0 0.0
    %98 = vmatpush.msra.mxu0 0.0
    %99 = vmatpush.msra.mxu0 0.0
    %100 = vmatpush.msra.mxu0 0.0
    %101 = vmatpush.msra.mxu0 0.0
    %102 = vmatpush.msra.mxu0 0.0
    %103 = vmatpush.msra.mxu0 0.0
    %104 = vmatpush.msra.mxu0 0.0
    %105 = vmatpush.msra.mxu0 0.0
    %106 = vmatpush.msra.mxu0 0.0
    %107 = vmatpush.msra.mxu0 0.0
    %v108 = vand.u32 %v39, 4294901760
    %v109 = vsub.f32 %v39, %v108
    %110 = vmatpush.msra.mxu0 %v109
    %v111 = vand.u32 %v35, 4294901760
    %v112 = vsub.f32 %v35, %v111
    %113 = vmatmul.f32.gmra.mxu0 %v112
    %v114 = vpop.f32.mrf.mxu0
    %v115 = vadd.f32 %v91, %v114
    %116 = vdwg.mxu0
    %117 = vmatpush.msra.mxu0 0.0
    %118 = vmatpush.msra.mxu0 0.0
    %119 = vmatpush.msra.mxu0 0.0
    %120 = vmatpush.msra.mxu0 0.0
    %121 = vmatpush.msra.mxu0 0.0
    %122 = vmatpush.msra.mxu0 0.0
    %123 = vmatpush.msra.mxu0 0.0
    %124 = vmatpush.msra.mxu0 0.0
    %125 = vmatpush.msra.mxu0 0.0
    %126 = vmatpush.msra.mxu0 0.0
    %127 = vmatpush.msra.mxu0 0.0
    %128 = vmatpush.msra.mxu0 0.0
    %129 = vmatpush.msra.mxu0 0.0
    %130 = vmatpush.msra.mxu0 0.0
    %131 = vmatpush.msra.mxu0 0.0
    %v132 = vand.u32 %v39, 4294901760
    %133 = vmatpush.msra.mxu0 %v132
    %v134 = vand.u32 %v35, 4294901760
    %v135 = vsub.f32 %v35, %v134
    %v136 = vand.u32 %v135, 4294901760
    %137 = vmatmul.f32.gmra.mxu0 %v136
    %v138 = vpop.f32.mrf.mxu0
    %v139 = vadd.f32 %v115, %v138
    %140 = vdwg.mxu0
    %141 = vmatpush.msra.mxu0 0.0
    %142 = vmatpush.msra.mxu0 0.0
    %143 = vmatpush.msra.mxu0 0.0
    %144 = vmatpush.msra.mxu0 0.0
    %145 = vmatpush.msra.mxu0 0.0
    %146 = vmatpush.msra.mxu0 0.0
    %147 = vmatpush.msra.mxu0 0.0
    %148 = vmatpush.msra.mxu0 0.0
    %149 = vmatpush.msra.mxu0 0.0
    %150 = vmatpush.msra.mxu0 0.0
    %151 = vmatpush.msra.mxu0 0.0
    %152 = vmatpush.msra.mxu0 0.0
    %153 = vmatpush.msra.mxu0 0.0
    %154 = vmatpush.msra.mxu0 0.0
    %155 = vmatpush.msra.mxu0 0.0
    %v156 = vand.u32 %v39, 4294901760
    %v157 = vsub.f32 %v39, %v156
    %v158 = vand.u32 %v157, 4294901760
    %159 = vmatpush.msra.mxu0 %v158
    %v160 = vand.u32 %v35, 4294901760
    %161 = vmatmul.f32.gmra.mxu0 %v160
    %v162 = vpop.f32.mrf.mxu0
    %v163 = vadd.f32 %v139, %v162
    %164 = vdwg.mxu0
    %165 = vmatpush.msra.mxu0 0.0
    %166 = vmatpush.msra.mxu0 0.0
    %167 = vmatpush.msra.mxu0 0.0
    %168 = vmatpush.msra.mxu0 0.0
    %169 = vmatpush.msra.mxu0 0.0
    %170 = vmatpush.msra.mxu0 0.0
    %171 = vmatpush.msra.mxu0 0.0
    %172 = vmatpush.msra.mxu0 0.0
    %173 = vmatpush.msra.mxu0 0.0
    %174 = vmatpush.msra.mxu0 0.0
    %175 = vmatpush.msra.mxu0 0.0
    %176 = vmatpush.msra.mxu0 0.0
    %177 = vmatpush.msra.mxu0 0.0
    %178 = vmatpush.msra.mxu0 0.0
    %179 = vmatpush.msra.mxu0 0.0
    %v180 = vand.u32 %v39, 4294901760
    %181 = vmatpush.msra.mxu0 %v180
    %v182 = vand.u32 %v35, 4294901760
    %183 = vmatmul.f32.gmra.mxu0 %v182
    %v184 = vpop.f32.mrf.mxu0
    %v185 = vadd.f32 %v163, %v184
    %186 = vdwg.mxu0
    %v187 = vmax.f32 %v185, 0.0
    %v188 = vld [vmem:[%s3] sm:$0xff]
    %v189 = vld [vmem:[%s3 + $0x8] sm:$0xff]
    %v190 = vld [vmem:[%s3 + $0x10] sm:$0xff]
    %v191 = vld [vmem:[%s3 + $0x18] sm:$0xff]
    %v192 = vld [vmem:[%s3 + $0x20] sm:$0xff]
    %v193 = vld [vmem:[%s3 + $0x28] sm:$0xff]
    %v194 = vld [vmem:[%s3 + $0x30] sm:$0xff]
    %v195 = vld [vmem:[%s3 + $0x38] sm:$0xff]
    %v196 = vld [vmem:[%s4] sm:$0x1]
    %v198 = vperm.slane %v196, 0
    %vm200 = vcmask 523264
    %v202 = vsel %vm200, %v187, 0
    %204 = vmatpush.msra.mxu0 0.0
    %205 = vmatpush.msra.mxu0 0.0
    %206 = vmatpush.msra.mxu0 0.0
    %207 = vmatpush.msra.mxu0 0.0
    %208 = vmatpush.msra.mxu0 0.0
    %209 = vmatpush.msra.mxu0 0.0
    %210 = vmatpush.msra.mxu0 0.0
    %211 = vmatpush.msra.mxu0 0.0
    %v212 = vand.u32 %v195, 4294901760
    %213 = vmatpush.msra.mxu0 %v212
    %v214 = vand.u32 %v194, 4294901760
    %215 = vmatpush.msra.mxu0 %v214
    %v216 = vand.u32 %v193, 4294901760
    %217 = vmatpush.msra.mxu0 %v216
    %v218 = vand.u32 %v192, 4294901760
    %219 = vmatpush.msra.mxu0 %v218
    %v220 = vand.u32 %v191, 4294901760
    %221 = vmatpush.msra.mxu0 %v220
    %v222 = vand.u32 %v190, 4294901760
    %223 = vmatpush.msra.mxu0 %v222
    %v224 = vand.u32 %v189, 4294901760
    %225 = vmatpush.msra.mxu0 %v224
    %v226 = vand.u32 %v188, 4294901760
    %227 = vmatpush.msra.mxu0 %v226
    %v228 = vand.u32 %v202, 4294901760
    %v229 = vsub.f32 %v202, %v228
    %v230 = vand.u32 %v229, 4294901760
    %v231 = vsub.f32 %v229, %v230
    %v232 = vand.u32 %v231, 4294901760
    %233 = vmatmul.f32.gmra.mxu0 %v232
    %v234 = vpop.f32.mrf.mxu0
    %v235 = vadd.f32 %v198, %v234
    %236 = vdwg.mxu0
    %237 = vmatpush.msra.mxu0 0.0
    %238 = vmatpush.msra.mxu0 0.0
    %239 = vmatpush.msra.mxu0 0.0
    %240 = vmatpush.msra.mxu0 0.0
    %241 = vmatpush.msra.mxu0 0.0
    %242 = vmatpush.msra.mxu0 0.0
    %243 = vmatpush.msra.mxu0 0.0
    %244 = vmatpush.msra.mxu0 0.0
    %v245 = vand.u32 %v195, 4294901760
    %v246 = vsub.f32 %v195, %v245
    %v247 = vand.u32 %v246, 4294901760
    %v248 = vsub.f32 %v246, %v247
    %v249 = vand.u32 %v248, 4294901760
    %250 = vmatpush.msra.mxu0 %v249
    %v251 = vand.u32 %v194, 4294901760
    %v252 = vsub.f32 %v194, %v251
    %v253 = vand.u32 %v252, 4294901760
    %v254 = vsub.f32 %v252, %v253
    %v255 = vand.u32 %v254, 4294901760
    %256 = vmatpush.msra.mxu0 %v255
    %v257 = vand.u32 %v193, 4294901760
    %v258 = vsub.f32 %v193, %v257
    %v259 = vand.u32 %v258, 4294901760
    %v260 = vsub.f32 %v258, %v259
    %v261 = vand.u32 %v260, 4294901760
    %262 = vmatpush.msra.mxu0 %v261
    %v263 = vand.u32 %v192, 4294901760
    %v264 = vsub.f32 %v192, %v263
    %v265 = vand.u32 %v264, 4294901760
    %v266 = vsub.f32 %v264, %v265
    %v267 = vand.u32 %v266, 4294901760
    %268 = vmatpush.msra.mxu0 %v267
    %v269 = vand.u32 %v191, 4294901760
    %v270 = vsub.f32 %v191, %v269
    %v271 = vand.u32 %v270, 4294901760
    %v272 = vsub.f32 %v270, %v271
    %v273 = vand.u32 %v272, 4294901760
    %274 = vmatpush.msra.mxu0 %v273
    %v275 = vand.u32 %v190, 4294901760
    %v276 = vsub.f32 %v190, %v275
    %v277 = vand.u32 %v276, 4294901760
    %v278 = vsub.f32 %v276, %v277
    %v279 = vand.u32 %v278, 4294901760
    %280 = vmatpush.msra.mxu0 %v279
    %v281 = vand.u32 %v189, 4294901760
    %v282 = vsub.f32 %v189, %v281
    %v283 = vand.u32 %v282, 4294901760
    %v284 = vsub.f32 %v282, %v283
    %v285 = vand.u32 %v284, 4294901760
    %286 = vmatpush.msra.mxu0 %v285
    %v287 = vand.u32 %v188, 4294901760
    %v288 = vsub.f32 %v188, %v287
    %v289 = vand.u32 %v288, 4294901760
    %v290 = vsub.f32 %v288, %v289
    %v291 = vand.u32 %v290, 4294901760
    %292 = vmatpush.msra.mxu0 %v291
    %v293 = vand.u32 %v202, 4294901760
    %294 = vmatmul.f32.gmra.mxu0 %v293
    %v295 = vpop.f32.mrf.mxu0
    %v296 = vadd.f32 %v235, %v295
    %297 = vdwg.mxu0
    %298 = vmatpush.msra.mxu0 0.0
    %299 = vmatpush.msra.mxu0 0.0
    %300 = vmatpush.msra.mxu0 0.0
    %301 = vmatpush.msra.mxu0 0.0
    %302 = vmatpush.msra.mxu0 0.0
    %303 = vmatpush.msra.mxu0 0.0
    %304 = vmatpush.msra.mxu0 0.0
    %305 = vmatpush.msra.mxu0 0.0
    %v306 = vand.u32 %v195, 4294901760
    %v307 = vsub.f32 %v195, %v306
    %308 = vmatpush.msra.mxu0 %v307
    %v309 = vand.u32 %v194, 4294901760
    %v310 = vsub.f32 %v194, %v309
    %311 = vmatpush.msra.mxu0 %v310
    %v312 = vand.u32 %v193, 4294901760
    %v313 = vsub.f32 %v193, %v312
    %314 = vmatpush.msra.mxu0 %v313
    %v315 = vand.u32 %v192, 4294901760
    %v316 = vsub.f32 %v192, %v315
    %317 = vmatpush.msra.mxu0 %v316
    %v318 = vand.u32 %v191, 4294901760
    %v319 = vsub.f32 %v191, %v318
    %320 = vmatpush.msra.mxu0 %v319
    %v321 = vand.u32 %v190, 4294901760
    %v322 = vsub.f32 %v190, %v321
    %323 = vmatpush.msra.mxu0 %v322
    %v324 = vand.u32 %v189, 4294901760
    %v325 = vsub.f32 %v189, %v324
    %326 = vmatpush.msra.mxu0 %v325
    %v327 = vand.u32 %v188, 4294901760
    %v328 = vsub.f32 %v188, %v327
    %329 = vmatpush.msra.mxu0 %v328
    %v330 = vand.u32 %v202, 4294901760
    %v331 = vsub.f32 %v202, %v330
    %332 = vmatmul.f32.gmra.mxu0 %v331
    %v333 = vpop.f32.mrf.mxu0
    %v334 = vadd.f32 %v296, %v333
    %335 = vdwg.mxu0
    %336 = vmatpush.msra.mxu0 0.0
    %337 = vmatpush.msra.mxu0 0.0
    %338 = vmatpush.msra.mxu0 0.0
    %339 = vmatpush.msra.mxu0 0.0
    %340 = vmatpush.msra.mxu0 0.0
    %341 = vmatpush.msra.mxu0 0.0
    %342 = vmatpush.msra.mxu0 0.0
    %343 = vmatpush.msra.mxu0 0.0
    %v344 = vand.u32 %v195, 4294901760
    %345 = vmatpush.msra.mxu0 %v344
    %v346 = vand.u32 %v194, 4294901760
    %347 = vmatpush.msra.mxu0 %v346
    %v348 = vand.u32 %v193, 4294901760
    %349 = vmatpush.msra.mxu0 %v348
    %v350 = vand.u32 %v192, 4294901760
    %351 = vmatpush.msra.mxu0 %v350
    %v352 = vand.u32 %v191, 4294901760
    %353 = vmatpush.msra.mxu0 %v352
    %v354 = vand.u32 %v190, 4294901760
    %355 = vmatpush.msra.mxu0 %v354
    %v356 = vand.u32 %v189, 4294901760
    %357 = vmatpush.msra.mxu0 %v356
    %v358 = vand.u32 %v188, 4294901760
    %359 = vmatpush.msra.mxu0 %v358
    %v360 = vand.u32 %v202, 4294901760
    %v361 = vsub.f32 %v202, %v360
    %v362 = vand.u32 %v361, 4294901760
    %363 = vmatmul.f32.gmra.mxu0 %v362
    %v364 = vpop.f32.mrf.mxu0
    %v365 = vadd.f32 %v334, %v364
    %366 = vdwg.mxu0
    %367 = vmatpush.msra.mxu0 0.0
    %368 = vmatpush.msra.mxu0 0.0
    %369 = vmatpush.msra.mxu0 0.0
    %370 = vmatpush.msra.mxu0 0.0
    %371 = vmatpush.msra.mxu0 0.0
    %372 = vmatpush.msra.mxu0 0.0
    %373 = vmatpush.msra.mxu0 0.0
    %374 = vmatpush.msra.mxu0 0.0
    %v375 = vand.u32 %v195, 4294901760
    %v376 = vsub.f32 %v195, %v375
    %v377 = vand.u32 %v376, 4294901760
    %378 = vmatpush.msra.mxu0 %v377
    %v379 = vand.u32 %v194, 4294901760
    %v380 = vsub.f32 %v194, %v379
    %v381 = vand.u32 %v380, 4294901760
    %382 = vmatpush.msra.mxu0 %v381
    %v383 = vand.u32 %v193, 4294901760
    %v384 = vsub.f32 %v193, %v383
    %v385 = vand.u32 %v384, 4294901760
    %386 = vmatpush.msra.mxu0 %v385
    %v387 = vand.u32 %v192, 4294901760
    %v388 = vsub.f32 %v192, %v387
    %v389 = vand.u32 %v388, 4294901760
    %390 = vmatpush.msra.mxu0 %v389
    %v391 = vand.u32 %v191, 4294901760
    %v392 = vsub.f32 %v191, %v391
    %v393 = vand.u32 %v392, 4294901760
    %394 = vmatpush.msra.mxu0 %v393
    %v395 = vand.u32 %v190, 4294901760
    %v396 = vsub.f32 %v190, %v395
    %v397 = vand.u32 %v396, 4294901760
    %398 = vmatpush.msra.mxu0 %v397
    %v399 = vand.u32 %v189, 4294901760
    %v400 = vsub.f32 %v189, %v399
    %v401 = vand.u32 %v400, 4294901760
    %402 = vmatpush.msra.mxu0 %v401
    %v403 = vand.u32 %v188, 4294901760
    %v404 = vsub.f32 %v188, %v403
    %v405 = vand.u32 %v404, 4294901760
    %406 = vmatpush.msra.mxu0 %v405
    %v407 = vand.u32 %v202, 4294901760
    %408 = vmatmul.f32.gmra.mxu0 %v407
    %v409 = vpop.f32.mrf.mxu0
    %v410 = vadd.f32 %v365, %v409
    %411 = vdwg.mxu0
    %412 = vmatpush.msra.mxu0 0.0
    %413 = vmatpush.msra.mxu0 0.0
    %414 = vmatpush.msra.mxu0 0.0
    %415 = vmatpush.msra.mxu0 0.0
    %416 = vmatpush.msra.mxu0 0.0
    %417 = vmatpush.msra.mxu0 0.0
    %418 = vmatpush.msra.mxu0 0.0
    %419 = vmatpush.msra.mxu0 0.0
    %v420 = vand.u32 %v195, 4294901760
    %421 = vmatpush.msra.mxu0 %v420
    %v422 = vand.u32 %v194, 4294901760
    %423 = vmatpush.msra.mxu0 %v422
    %v424 = vand.u32 %v193, 4294901760
    %425 = vmatpush.msra.mxu0 %v424
    %v426 = vand.u32 %v192, 4294901760
    %427 = vmatpush.msra.mxu0 %v426
    %v428 = vand.u32 %v191, 4294901760
    %429 = vmatpush.msra.mxu0 %v428
    %v430 = vand.u32 %v190, 4294901760
    %431 = vmatpush.msra.mxu0 %v430
    %v432 = vand.u32 %v189, 4294901760
    %433 = vmatpush.msra.mxu0 %v432
    %v434 = vand.u32 %v188, 4294901760
    %435 = vmatpush.msra.mxu0 %v434
    %v436 = vand.u32 %v202, 4294901760
    %437 = vmatmul.f32.gmra.mxu0 %v436
    %v438 = vpop.f32.mrf.mxu0
    %v439 = vadd.f32 %v410, %v438
    %440 = vdwg.mxu0
    %v441 = vmax.f32 %v439, 0.0
    %v442 = vld [vmem:[%s5] sm:$0xff]
    %v443 = vld [vmem:[%s5 + $0x8] sm:$0xff]
    %v444 = vld [vmem:[%s5 + $0x10] sm:$0xff]
    %v445 = vld [vmem:[%s5 + $0x18] sm:$0xff]
    %v446 = vld [vmem:[%s6] sm:$0x1]
    %v448 = vperm.slane %v446, 0
    %vm450 = vcmask 261120
    %v452 = vsel %vm450, %v441, 0
    %454 = vmatpush.msra.mxu0 0.0
    %455 = vmatpush.msra.mxu0 0.0
    %456 = vmatpush.msra.mxu0 0.0
    %457 = vmatpush.msra.mxu0 0.0
    %458 = vmatpush.msra.mxu0 0.0
    %459 = vmatpush.msra.mxu0 0.0
    %460 = vmatpush.msra.mxu0 0.0
    %461 = vmatpush.msra.mxu0 0.0
    %462 = vmatpush.msra.mxu0 0.0
    %463 = vmatpush.msra.mxu0 0.0
    %464 = vmatpush.msra.mxu0 0.0
    %465 = vmatpush.msra.mxu0 0.0
    %v466 = vand.u32 %v445, 4294901760
    %467 = vmatpush.msra.mxu0 %v466
    %v468 = vand.u32 %v444, 4294901760
    %469 = vmatpush.msra.mxu0 %v468
    %v470 = vand.u32 %v443, 4294901760
    %471 = vmatpush.msra.mxu0 %v470
    %v472 = vand.u32 %v442, 4294901760
    %473 = vmatpush.msra.mxu0 %v472
    %v474 = vand.u32 %v452, 4294901760
    %v475 = vsub.f32 %v452, %v474
    %v476 = vand.u32 %v475, 4294901760
    %v477 = vsub.f32 %v475, %v476
    %v478 = vand.u32 %v477, 4294901760
    %479 = vmatmul.f32.gmra.mxu0 %v478
    %v480 = vpop.f32.mrf.mxu0
    %v481 = vadd.f32 %v448, %v480
    %482 = vdwg.mxu0
    %483 = vmatpush.msra.mxu0 0.0
    %484 = vmatpush.msra.mxu0 0.0
    %485 = vmatpush.msra.mxu0 0.0
    %486 = vmatpush.msra.mxu0 0.0
    %487 = vmatpush.msra.mxu0 0.0
    %488 = vmatpush.msra.mxu0 0.0
    %489 = vmatpush.msra.mxu0 0.0
    %490 = vmatpush.msra.mxu0 0.0
    %491 = vmatpush.msra.mxu0 0.0
    %492 = vmatpush.msra.mxu0 0.0
    %493 = vmatpush.msra.mxu0 0.0
    %494 = vmatpush.msra.mxu0 0.0
    %v495 = vand.u32 %v445, 4294901760
    %v496 = vsub.f32 %v445, %v495
    %v497 = vand.u32 %v496, 4294901760
    %v498 = vsub.f32 %v496, %v497
    %v499 = vand.u32 %v498, 4294901760
    %500 = vmatpush.msra.mxu0 %v499
    %v501 = vand.u32 %v444, 4294901760
    %v502 = vsub.f32 %v444, %v501
    %v503 = vand.u32 %v502, 4294901760
    %v504 = vsub.f32 %v502, %v503
    %v505 = vand.u32 %v504, 4294901760
    %506 = vmatpush.msra.mxu0 %v505
    %v507 = vand.u32 %v443, 4294901760
    %v508 = vsub.f32 %v443, %v507
    %v509 = vand.u32 %v508, 4294901760
    %v510 = vsub.f32 %v508, %v509
    %v511 = vand.u32 %v510, 4294901760
    %512 = vmatpush.msra.mxu0 %v511
    %v513 = vand.u32 %v442, 4294901760
    %v514 = vsub.f32 %v442, %v513
    %v515 = vand.u32 %v514, 4294901760
    %v516 = vsub.f32 %v514, %v515
    %v517 = vand.u32 %v516, 4294901760
    %518 = vmatpush.msra.mxu0 %v517
    %v519 = vand.u32 %v452, 4294901760
    %520 = vmatmul.f32.gmra.mxu0 %v519
    %v521 = vpop.f32.mrf.mxu0
    %v522 = vadd.f32 %v481, %v521
    %523 = vdwg.mxu0
    %524 = vmatpush.msra.mxu0 0.0
    %525 = vmatpush.msra.mxu0 0.0
    %526 = vmatpush.msra.mxu0 0.0
    %527 = vmatpush.msra.mxu0 0.0
    %528 = vmatpush.msra.mxu0 0.0
    %529 = vmatpush.msra.mxu0 0.0
    %530 = vmatpush.msra.mxu0 0.0
    %531 = vmatpush.msra.mxu0 0.0
    %532 = vmatpush.msra.mxu0 0.0
    %533 = vmatpush.msra.mxu0 0.0
    %534 = vmatpush.msra.mxu0 0.0
    %535 = vmatpush.msra.mxu0 0.0
    %v536 = vand.u32 %v445, 4294901760
    %v537 = vsub.f32 %v445, %v536
    %538 = vmatpush.msra.mxu0 %v537
    %v539 = vand.u32 %v444, 4294901760
    %v540 = vsub.f32 %v444, %v539
    %541 = vmatpush.msra.mxu0 %v540
    %v542 = vand.u32 %v443, 4294901760
    %v543 = vsub.f32 %v443, %v542
    %544 = vmatpush.msra.mxu0 %v543
    %v545 = vand.u32 %v442, 4294901760
    %v546 = vsub.f32 %v442, %v545
    %547 = vmatpush.msra.mxu0 %v546
    %v548 = vand.u32 %v452, 4294901760
    %v549 = vsub.f32 %v452, %v548
    %550 = vmatmul.f32.gmra.mxu0 %v549
    %v551 = vpop.f32.mrf.mxu0
    %v552 = vadd.f32 %v522, %v551
    %553 = vdwg.mxu0
    %554 = vmatpush.msra.mxu0 0.0
    %555 = vmatpush.msra.mxu0 0.0
    %556 = vmatpush.msra.mxu0 0.0
    %557 = vmatpush.msra.mxu0 0.0
    %558 = vmatpush.msra.mxu0 0.0
    %559 = vmatpush.msra.mxu0 0.0
    %560 = vmatpush.msra.mxu0 0.0
    %561 = vmatpush.msra.mxu0 0.0
    %562 = vmatpush.msra.mxu0 0.0
    %563 = vmatpush.msra.mxu0 0.0
    %564 = vmatpush.msra.mxu0 0.0
    %565 = vmatpush.msra.mxu0 0.0
    %v566 = vand.u32 %v445, 4294901760
    %567 = vmatpush.msra.mxu0 %v566
    %v568 = vand.u32 %v444, 4294901760
    %569 = vmatpush.msra.mxu0 %v568
    %v570 = vand.u32 %v443, 4294901760
    %571 = vmatpush.msra.mxu0 %v570
    %v572 = vand.u32 %v442, 4294901760
    %573 = vmatpush.msra.mxu0 %v572
    %v574 = vand.u32 %v452, 4294901760
    %v575 = vsub.f32 %v452, %v574
    %v576 = vand.u32 %v575, 4294901760
    %577 = vmatmul.f32.gmra.mxu0 %v576
    %v578 = vpop.f32.mrf.mxu0
    %v579 = vadd.f32 %v552, %v578
    %580 = vdwg.mxu0
    %581 = vmatpush.msra.mxu0 0.0
    %582 = vmatpush.msra.mxu0 0.0
    %583 = vmatpush.msra.mxu0 0.0
    %584 = vmatpush.msra.mxu0 0.0
    %585 = vmatpush.msra.mxu0 0.0
    %586 = vmatpush.msra.mxu0 0.0
    %587 = vmatpush.msra.mxu0 0.0
    %588 = vmatpush.msra.mxu0 0.0
    %589 = vmatpush.msra.mxu0 0.0
    %590 = vmatpush.msra.mxu0 0.0
    %591 = vmatpush.msra.mxu0 0.0
    %592 = vmatpush.msra.mxu0 0.0
    %v593 = vand.u32 %v445, 4294901760
    %v594 = vsub.f32 %v445, %v593
    %v595 = vand.u32 %v594, 4294901760
    %596 = vmatpush.msra.mxu0 %v595
    %v597 = vand.u32 %v444, 4294901760
    %v598 = vsub.f32 %v444, %v597
    %v599 = vand.u32 %v598, 4294901760
    %600 = vmatpush.msra.mxu0 %v599
    %v601 = vand.u32 %v443, 4294901760
    %v602 = vsub.f32 %v443, %v601
    %v603 = vand.u32 %v602, 4294901760
    %604 = vmatpush.msra.mxu0 %v603
    %v605 = vand.u32 %v442, 4294901760
    %v606 = vsub.f32 %v442, %v605
    %v607 = vand.u32 %v606, 4294901760
    %608 = vmatpush.msra.mxu0 %v607
    %v609 = vand.u32 %v452, 4294901760
    %610 = vmatmul.f32.gmra.mxu0 %v609
    %v611 = vpop.f32.mrf.mxu0
    %v612 = vadd.f32 %v579, %v611
    %613 = vdwg.mxu0
    %614 = vmatpush.msra.mxu0 0.0
    %615 = vmatpush.msra.mxu0 0.0
    %616 = vmatpush.msra.mxu0 0.0
    %617 = vmatpush.msra.mxu0 0.0
    %618 = vmatpush.msra.mxu0 0.0
    %619 = vmatpush.msra.mxu0 0.0
    %620 = vmatpush.msra.mxu0 0.0
    %621 = vmatpush.msra.mxu0 0.0
    %622 = vmatpush.msra.mxu0 0.0
    %623 = vmatpush.msra.mxu0 0.0
    %624 = vmatpush.msra.mxu0 0.0
    %625 = vmatpush.msra.mxu0 0.0
    %v626 = vand.u32 %v445, 4294901760
    %627 = vmatpush.msra.mxu0 %v626
    %v628 = vand.u32 %v444, 4294901760
    %629 = vmatpush.msra.mxu0 %v628
    %v630 = vand.u32 %v443, 4294901760
    %631 = vmatpush.msra.mxu0 %v630
    %v632 = vand.u32 %v442, 4294901760
    %633 = vmatpush.msra.mxu0 %v632
    %v634 = vand.u32 %v452, 4294901760
    %635 = vmatmul.f32.gmra.mxu0 %v634
    %v636 = vpop.f32.mrf.mxu0
    %v637 = vadd.f32 %v612, %v636
    %638 = vdwg.mxu0
    %vm639 = vcmask 39936
    %640 = vst.msk [vmem:[#allocation2] sm:$0xff] %vm639, %v637
    // Predicated region
    $region30: #{behavior_cloning_forward.1} parent=1 // pred_check
      _
    $region31: #{behavior_cloning_forward.1} parent=1 // pred_check_branch
      %642 = sbr.rel (0) target = $region33
    $region32: #{behavior_cloning_forward.1} parent=1 // pred_region
      %644 = vsyncadd [#allocation3], 0
      %s646 = sshll.u32 [#allocation2], 4
      %s647 = int_to_ptr.vmem [resolvable:$true] %s646
      %s648 = sshll.u32 %s7, 4
      %s649 = int_to_ptr.hbm [resolvable:$true] %s648
      %651 = dma.vmem_to_hbm [thread:$0]  %s647, 128, %s649, [#allocation3]
    $region33: #{behavior_cloning_forward.1} parent=1 // pred_fallthru
      _
    // Predicated region
    $region34: #{behavior_cloning_forward.1} parent=1 // pred_check
      _
    $region35: #{behavior_cloning_forward.1} parent=1 // pred_check_branch
      %653 = sbr.rel (0) target = $region37
    $region36: #{behavior_cloning_forward.1} parent=1 // pred_region
      %655 = dma.done [#allocation3], 128
    $region37: #{behavior_cloning_forward.1} parent=1 // pred_fallthru
      _
    %656 = vsyncpa [#allocation3], 1

</llo_original>
